<compile_context>
chip_gen: v6e
topology: v6e:2x2x1
jax: 0.10.0
libtpu: 0.0.40
codegen_flags: <defaults>
</compile_context>

<pallas_src>
import functools

import jax
import jax.numpy as jnp
import numpy as np
from jax.experimental import pallas as pl
from jax.experimental.pallas import tpu as pltpu

_VMEM_LIMIT = 32 * 1024 * 1024  # safe on v5e/v6e/v7x


# ------------------------------ tiled linear --------------------------------

def _pick_tile(dim, target, align):
    """Largest tile <= target that is a multiple of `align` and divides `dim`;
    falls back to the full dim (always legal for BlockSpec)."""
    if dim <= target:
        return dim
    t = (target // align) * align
    while t >= align:
        if dim % t == 0:
            return t
        t -= align
    return dim


def _linear_kernel(x_ref, w_ref, b_ref, o_ref, acc_ref):
    # o = x @ W^T + b, with W kept in PyTorch (out, in) layout (no transpose:
    # contract the last dims of both operands -- MXU-native 'nt' form).
    k = pl.program_id(2)

    @pl.when(k == 0)
    def _():
        acc_ref[...] = jnp.zeros_like(acc_ref)

    acc_ref[...] += jax.lax.dot_general(
        x_ref[...], w_ref[...],
        dimension_numbers=(((1,), (1,)), ((), ())),
        preferred_element_type=jnp.float32)

    @pl.when(k == pl.num_programs(2) - 1)
    def _():
        o_ref[...] = (acc_ref[...] + b_ref[...]).astype(o_ref.dtype)


def linear(x, w, b):
    """x: (N, in), w: (out, in) [PyTorch layout], b: (out,) -> (N, out) f32."""
    n, k_dim = x.shape
    out_dim = w.shape[0]
    tm = _pick_tile(n, 256, 8)
    tn = _pick_tile(out_dim, 256, 128)
    tk = _pick_tile(k_dim, 512, 128)
    grid = (n // tm, out_dim // tn, k_dim // tk)

    return pl.pallas_call(
        _linear_kernel,
        out_shape=jax.ShapeDtypeStruct((n, out_dim), jnp.float32),
        grid_spec=pltpu.PrefetchScalarGridSpec(
            num_scalar_prefetch=0,
            grid=grid,
            in_specs=[
                pl.BlockSpec((tm, tk), lambda i, j, kk: (i, kk)),
                pl.BlockSpec((tn, tk), lambda i, j, kk: (j, kk)),
                pl.BlockSpec((1, tn), lambda i, j, kk: (0, j)),
            ],
            out_specs=pl.BlockSpec((tm, tn), lambda i, j, kk: (i, j)),
            scratch_shapes=[pltpu.VMEM((tm, tn), jnp.float32)],
        ),
        compiler_params=pltpu.CompilerParams(
            dimension_semantics=("parallel", "parallel", "arbitrary"),
            vmem_limit_bytes=_VMEM_LIMIT),
        cost_estimate=pl.CostEstimate(
            flops=2 * n * k_dim * out_dim,
            transcendentals=0,
            bytes_accessed=4 * (n * k_dim + out_dim * k_dim + out_dim + n * out_dim)),
    )(x, w, b.reshape(1, out_dim))


# --------------------------- packed-head attention ---------------------------

def _attn_body(q, k, v, mask, o_ref, w_ref, *, scaling, num_heads, head_dim):
    """q: (T, E), k/v: (S, E), mask: (T, S) f32 or None.
    Writes attention output (lane-dense (T, E)) and head-averaged weights."""
    tgt_len, _ = q.shape
    src_len = k.shape[0]

    q = q * scaling                                  # applied once per batch block
    w_acc = jnp.zeros((tgt_len, src_len), jnp.float32)

    # Heads are independent; the loop is statically unrolled -> lane slices of the
    # (·, E) blocks, plain 2-D MXU matmuls, one lane-dense (T, E) output store.
    for h in range(num_heads):
        sl = slice(h * head_dim, (h + 1) * head_dim)
        qh = q[:, sl]                                # (T, d)
        kh = k[:, sl]                                # (S, d)
        vh = v[:, sl]                                # (S, d)

        scores = jax.lax.dot_general(                # (T, S), contract last dims
            qh, kh, dimension_numbers=(((1,), (1,)), ((), ())),
            preferred_element_type=jnp.float32)
        if mask is not None:
            scores = scores + mask

        m = jnp.max(scores, axis=-1, keepdims=True)
        e = jnp.exp(scores - m)
        p = e * pl.reciprocal(jnp.sum(e, axis=-1, keepdims=True), approx=False)

        o_ref[0, :, sl] = jnp.dot(p, vh, preferred_element_type=jnp.float32)
        w_acc = w_acc + p

    w_ref[0] = w_acc * (1.0 / num_heads)


def _attention_kernel(q_ref, k_ref, v_ref, o_ref, w_ref, **kw):
    _attn_body(q_ref[0], k_ref[0], v_ref[0], None, o_ref, w_ref, **kw)


def _attention_kernel_masked(q_ref, k_ref, v_ref, mask_ref, o_ref, w_ref, **kw):
    _attn_body(q_ref[0], k_ref[0], v_ref[0], mask_ref[...], o_ref, w_ref, **kw)


def attention(q, k, v, mask, *, scaling, num_heads):
    """q: (B, T, E), k/v: (B, S, E), mask: (T, S) additive or None.

    Returns:
      attn:        (B, T, E)   (heads already merged on the lane axis)
      avg_weights: (B, T, S)   (mean over heads of the softmax weights)
    """
    bsz, tgt_len, embed_dim = q.shape
    src_len = k.shape[1]
    head_dim = embed_dim // num_heads

    in_specs = [
        pl.BlockSpec((1, tgt_len, embed_dim), lambda b: (b, 0, 0)),
        pl.BlockSpec((1, src_len, embed_dim), lambda b: (b, 0, 0)),
        pl.BlockSpec((1, src_len, embed_dim), lambda b: (b, 0, 0)),
    ]
    args = [q, k, v]
    common = dict(scaling=scaling, num_heads=num_heads, head_dim=head_dim)
    if mask is None:
        kernel = functools.partial(_attention_kernel, **common)
        mask_bytes = 0
    else:
        kernel = functools.partial(_attention_kernel_masked, **common)
        in_specs.append(pl.BlockSpec((tgt_len, src_len), lambda b: (0, 0)))
        args.append(mask.astype(jnp.float32))
        mask_bytes = 4 * tgt_len * src_len

    flops = 4 * bsz * num_heads * tgt_len * src_len * head_dim
    bytes_accessed = 4 * (2 * bsz * tgt_len * embed_dim
                          + 2 * bsz * src_len * embed_dim
                          + bsz * tgt_len * src_len) + mask_bytes

    return pl.pallas_call(
        kernel,
        out_shape=(
            jax.ShapeDtypeStruct((bsz, tgt_len, embed_dim), jnp.float32),
            jax.ShapeDtypeStruct((bsz, tgt_len, src_len), jnp.float32),
        ),
        grid_spec=pltpu.PrefetchScalarGridSpec(
            num_scalar_prefetch=0,
            grid=(bsz,),
            in_specs=in_specs,
            out_specs=[
                pl.BlockSpec((1, tgt_len, embed_dim), lambda b: (b, 0, 0)),
                pl.BlockSpec((1, tgt_len, src_len), lambda b: (b, 0, 0)),
            ],
        ),
        compiler_params=pltpu.CompilerParams(
            dimension_semantics=("parallel",),
            vmem_limit_bytes=_VMEM_LIMIT),
        cost_estimate=pl.CostEstimate(
            flops=flops,
            transcendentals=bsz * num_heads * tgt_len * src_len,
            bytes_accessed=bytes_accessed),
    )(*args)


# --------------------------- Module-level wrapper ---------------------------

def xavier_uniform(key, shape):
    fan_out, fan_in = shape
    bound = float(np.sqrt(6.0 / (fan_in + fan_out)))
    return jax.random.uniform(key, shape, jnp.float32, -bound, bound)


def init_params(key, embed_dim):
    k1, k2 = jax.random.split(key)
    return {
        "in_proj_weight": xavier_uniform(k1, (3 * embed_dim, embed_dim)),
        "in_proj_bias": jnp.zeros((3 * embed_dim,), jnp.float32),
        "out_proj_weight": xavier_uniform(k2, (embed_dim, embed_dim)),
        "out_proj_bias": jnp.zeros((embed_dim,), jnp.float32),
    }


def multimodal_attention(params, query, key, value, num_heads, attn_mask=None):
    """query/key/value: (T, B, E) time-major, like the PyTorch module."""
    tgt_len, bsz, embed_dim = query.shape
    src_len = key.shape[0]
    head_dim = embed_dim // num_heads
    scaling = head_dim ** (-0.5)

    W = params["in_proj_weight"]   # (3E, E)
    b = params["in_proj_bias"]     # (3E,)

    # Mirror the PyTorch data_ptr checks with python identity (works outside jit;
    # under jit distinct tracers just fall back to the general path -- still correct).
    qkv_same = (query is key) and (key is value)
    kv_same = key is value

    if qkv_same:
        # Single fused in-projection: one pallas_call, x read once, 3E-wide output.
        qkv2 = linear(query.reshape(tgt_len * bsz, embed_dim), W, b)       # (T*B, 3E)
        qkv = qkv2.reshape(tgt_len, bsz, 3, embed_dim).transpose(2, 1, 0, 3)
        q_bte, k_bse, v_bse = qkv[0], qkv[1], qkv[2]                        # (B, T, E)
    elif kv_same:
        q2 = linear(query.reshape(tgt_len * bsz, embed_dim),
                    W[:embed_dim], b[:embed_dim])                           # (T*B, E)
        kv2 = linear(key.reshape(src_len * bsz, embed_dim),
                     W[embed_dim:], b[embed_dim:])                          # (S*B, 2E)
        q_bte = q2.reshape(tgt_len, bsz, embed_dim).transpose(1, 0, 2)
        kv = kv2.reshape(src_len, bsz, 2, embed_dim).transpose(2, 1, 0, 3)  # (2,B,S,E)
        k_bse, v_bse = kv[0], kv[1]
    else:
        q2 = linear(query.reshape(tgt_len * bsz, embed_dim),
                    W[:embed_dim], b[:embed_dim])
        k2 = linear(key.reshape(src_len * bsz, embed_dim),
                    W[embed_dim:2 * embed_dim], b[embed_dim:2 * embed_dim])
        v2 = linear(value.reshape(src_len * bsz, embed_dim),
                    W[2 * embed_dim:], b[2 * embed_dim:])
        q_bte = q2.reshape(tgt_len, bsz, embed_dim).transpose(1, 0, 2)
        k_bse = k2.reshape(src_len, bsz, embed_dim).transpose(1, 0, 2)
        v_bse = v2.reshape(src_len, bsz, embed_dim).transpose(1, 0, 2)

    mask = None if attn_mask is None else attn_mask.astype(jnp.float32)

    # Fused attention: all heads per batch, lane-dense (B, T, E) output,
    # head-averaged weights computed in-kernel.
    attn_bte, avg_weights = attention(q_bte, k_bse, v_bse, mask,
                                      scaling=scaling, num_heads=num_heads)

    # Output projection on the batch-major slab, then back to time-major (T, B, E).
    out2 = linear(attn_bte.reshape(bsz * tgt_len, embed_dim),
                  params["out_proj_weight"], params["out_proj_bias"])
    out = out2.reshape(bsz, tgt_len, embed_dim).transpose(1, 0, 2)

    return out, avg_weights  # (T, B, E), (B, T_q, T_k)


# ------------------------------- reference ---------------------------------

def reference(params, query, key, value, num_heads, attn_mask=None):
    tgt_len, bsz, embed_dim = query.shape
    src_len = key.shape[0]
    head_dim = embed_dim // num_heads
    scaling = head_dim ** (-0.5)
    W, b = params["in_proj_weight"], params["in_proj_bias"]

    def lin(x, w, bb):
        return x @ w.T + bb

    q = lin(query, W[:embed_dim], b[:embed_dim]) * scaling
    k = lin(key, W[embed_dim:2 * embed_dim], b[embed_dim:2 * embed_dim])
    v = lin(value, W[2 * embed_dim:], b[2 * embed_dim:])

    q = q.reshape(tgt_len, bsz * num_heads, head_dim).transpose(1, 0, 2)
    k = k.reshape(src_len, bsz * num_heads, head_dim).transpose(1, 0, 2)
    v = v.reshape(src_len, bsz * num_heads, head_dim).transpose(1, 0, 2)

    w_attn = jnp.einsum("btd,bsd->bts", q, k)
    if attn_mask is not None:
        w_attn = w_attn + attn_mask[None]
    w_attn = jax.nn.softmax(w_attn, axis=-1)
    attn = jnp.einsum("bts,bsd->btd", w_attn, v)
    attn = attn.transpose(1, 0, 2).reshape(tgt_len, bsz, embed_dim)
    attn = attn @ params["out_proj_weight"].T + params["out_proj_bias"]
    w_avg = w_attn.reshape(bsz, num_heads, tgt_len, src_len).sum(1) / num_heads
    return attn, w_avg


# --------------------------------- main -------------------------------------

if __name__ == "__main__":
    embed_dim, num_heads = 32, 4
    tgt_len, src_len, bsz = 8, 8, 2

    root = jax.random.PRNGKey(0)
    kp, kq, kk, kv = jax.random.split(root, 4)
    params = init_params(kp, embed_dim)

    query = jax.random.normal(kq, (tgt_len, bsz, embed_dim), jnp.float32)
    key = jax.random.normal(kk, (src_len, bsz, embed_dim), jnp.float32)
    value = jax.random.normal(kv, (src_len, bsz, embed_dim), jnp.float32)
    causal_mask = jnp.where(jnp.tril(jnp.ones((tgt_len, src_len), bool)),
                            0.0, -1e9).astype(jnp.float32)

    cases = [
        ("self_attn_fused_qkv", query, query, query, None),
        ("cross_modal_fused_kv", query, key, key, None),
        ("distinct_qkv_masked", query, key, value, causal_mask),
    ]

    for name, q_, k_, v_, m_ in cases:
        out, weights = multimodal_attention(params, q_, k_, v_, num_heads,
                                            attn_mask=m_)
        out = jax.block_until_ready(out)
        weights = jax.block_until_ready(weights)

        ref_out, ref_w = reference(params, q_, k_, v_, num_heads, attn_mask=m_)
        np.testing.assert_allclose(np.asarray(out), np.asarray(ref_out),
                                   rtol=1e-5, atol=1e-5, err_msg=name)
        np.testing.assert_allclose(np.asarray(weights), np.asarray(ref_w),
                                   rtol=1e-5, atol=1e-5, err_msg=name)
        assert out.shape == (tgt_len, bsz, embed_dim)
        assert weights.shape == (bsz, tgt_len, src_len)

    print("KERNEL_OK")
</pallas_src>

<mosaic_0001>
module attributes {stable_mosaic.version = 11 : i64} {
  func.func @_linear_kernel(%arg0: i32, %arg1: i32, %arg2: i32, %arg3: memref<16x32xf32, #tpu.memory_space<vmem>>, %arg4: memref<96x32xf32, #tpu.memory_space<vmem>>, %arg5: memref<1x96xf32, #tpu.memory_space<vmem>>, %arg6: memref<16x96xf32, #tpu.memory_space<vmem>>, %arg7: memref<16x96xf32, #tpu.memory_space<vmem>>) attributes {dimension_semantics = [#tpu.dimension_semantics<parallel>, #tpu.dimension_semantics<parallel>, #tpu.dimension_semantics<arbitrary>], iteration_bounds = array<i64: 1, 1, 1>, scalar_prefetch = 0 : i64, scratch_operands = 1 : i64, tpu.core_type = #tpu.core_type<tc>, window_params = [{transform_indices = @transform_0, window_bounds = array<i64: 16, 32>}, {transform_indices = @transform_1, window_bounds = array<i64: 96, 32>}, {transform_indices = @transform_2, window_bounds = array<i64: 1, 96>}, {transform_indices = @transform_3, window_bounds = array<i64: 16, 96>}]} {
    %c0_i32 = arith.constant 0 : i32
    %0 = arith.cmpi eq, %arg2, %c0_i32 : i32
    %1 = arith.extui %0 : i1 to i32
    %c0_i32_0 = arith.constant 0 : i32
    %2 = arith.cmpi ne, %1, %c0_i32_0 : i32
    scf.if %2 {
      %cst_10 = arith.constant 0.000000e+00 : f32
      %12 = vector.broadcast %cst_10 : f32 to vector<16x96xf32>
      %c0_11 = arith.constant 0 : index
      %c0_12 = arith.constant 0 : index
      %13 = vector.load %arg7[%c0_11, %c0_12] : memref<16x96xf32, #tpu.memory_space<vmem>>, vector<16x96xf32>
      tpu.vector_store %arg7[%c0_11, %c0_12], %12 {strides = array<i32>} : memref<16x96xf32, #tpu.memory_space<vmem>>, vector<16x96xf32>,
    } else {
    }
    %c0 = arith.constant 0 : index
    %c0_1 = arith.constant 0 : index
    %3 = vector.load %arg7[%c0, %c0_1] : memref<16x96xf32, #tpu.memory_space<vmem>>, vector<16x96xf32>
    %c0_2 = arith.constant 0 : index
    %c0_3 = arith.constant 0 : index
    %4 = vector.load %arg3[%c0_2, %c0_3] : memref<16x32xf32, #tpu.memory_space<vmem>>, vector<16x32xf32>
    %c0_4 = arith.constant 0 : index
    %c0_5 = arith.constant 0 : index
    %5 = vector.load %arg4[%c0_4, %c0_5] : memref<96x32xf32, #tpu.memory_space<vmem>>, vector<96x32xf32>
    %cst = arith.constant dense<0.000000e+00> : vector<16x96xf32>
    %6 = tpu.matmul %4, %5, %cst {dimension_numbers = #tpu.dot_dimension_numbers<[1], [1], [0], [0], [0, 0, 1, 0], [], []>} : vector<16x32xf32>, vector<96x32xf32>, vector<16x96xf32> -> vector<16x96xf32>
    %7 = arith.addf %3, %6 : vector<16x96xf32>
    %c0_6 = arith.constant 0 : index
    %c0_7 = arith.constant 0 : index
    %8 = vector.load %arg7[%c0_6, %c0_7] : memref<16x96xf32, #tpu.memory_space<vmem>>, vector<16x96xf32>
    tpu.vector_store %arg7[%c0_6, %c0_7], %7 {strides = array<i32>} : memref<16x96xf32, #tpu.memory_space<vmem>>, vector<16x96xf32>,
    %c0_i32_8 = arith.constant 0 : i32
    %9 = arith.cmpi eq, %arg2, %c0_i32_8 : i32
    %10 = arith.extui %9 : i1 to i32
    %c0_i32_9 = arith.constant 0 : i32
    %11 = arith.cmpi ne, %10, %c0_i32_9 : i32
    scf.if %11 {
      %c0_10 = arith.constant 0 : index
      %c0_11 = arith.constant 0 : index
      %12 = vector.load %arg7[%c0_10, %c0_11] : memref<16x96xf32, #tpu.memory_space<vmem>>, vector<16x96xf32>
      %c0_12 = arith.constant 0 : index
      %c0_13 = arith.constant 0 : index
      %13 = vector.load %arg5[%c0_12, %c0_13] : memref<1x96xf32, #tpu.memory_space<vmem>>, vector<1x96xf32>
      %14 = vector.broadcast %13 : vector<1x96xf32> to vector<16x96xf32>
      %15 = arith.addf %12, %14 : vector<16x96xf32>
      %c0_14 = arith.constant 0 : index
      %c0_15 = arith.constant 0 : index
      %16 = vector.load %arg6[%c0_14, %c0_15] : memref<16x96xf32, #tpu.memory_space<vmem>>, vector<16x96xf32>
      tpu.vector_store %arg6[%c0_14, %c0_15], %15 {strides = array<i32>} : memref<16x96xf32, #tpu.memory_space<vmem>>, vector<16x96xf32>,
    } else {
    }
    return
  }
  func.func @transform_0(%arg0: i32, %arg1: i32, %arg2: i32) -> (i32, i32) {
    %c0_i32 = arith.constant 0 : i32
    return %arg0, %arg2 : i32, i32
  }
  func.func @transform_1(%arg0: i32, %arg1: i32, %arg2: i32) -> (i32, i32) {
    %c0_i32 = arith.constant 0 : i32
    return %arg1, %arg2 : i32, i32
  }
  func.func @transform_2(%arg0: i32, %arg1: i32, %arg2: i32) -> (i32, i32) {
    %c0_i32 = arith.constant 0 : i32
    %c0_i32_0 = arith.constant 0 : i32
    return %c0_i32, %arg1 : i32, i32
  }
  func.func @transform_3(%arg0: i32, %arg1: i32, %arg2: i32) -> (i32, i32) {
    %c0_i32 = arith.constant 0 : i32
    return %arg0, %arg1 : i32, i32
  }
}

</mosaic_0001>

<llo_original>
// kernel: tpu_custom_call.1
$region0: #{tpu_custom_call.1}
  #allocation0 [shape = 'u32[]', space=smem, size = 0x4, offset = 0x4, fixed_abs, tag = 'smem constant byte address 0x4 - core index']
  #allocation1 [shape = 'u32[144,128]{1,0:T(1,128)}', space=vmem, size = 0x12000, scoped, tag = 'internal scratch']
  #allocation2 [shape = 'f32[16,96]{1,0:T(8,128)}', space=vmem, size = 0x2000, scoped, tag = 'scratch operand']
  %s0 = inlined_call_operand.vmem [shape: f32[16,32], index: 0, kind: input, shape index: {}]
  %s1 = inlined_call_operand.vmem [shape: f32[96,32], index: 1, kind: input, shape index: {}]
  %s2 = inlined_call_operand.vmem [shape: f32[1,96], index: 2, kind: input, shape index: {}]
  %s3 = inlined_call_operand.hbm [shape: f32[16,96], index: 3, kind: output, shape index: {}]
  %s4 = sld [smem:[#allocation0]]
  $region30: #{tpu_custom_call.1} parent=0
    _
  %s6 = ssub.s32 1, %s4
  %s7 = scalar_select 0, %s6, %s4
  $region1: #{tpu_custom_call.1} parent=0
    #allocation3 [shape = 'u8[8192]{0}', space=vmem, size = 0x2000, scoped, tag = 'output window, operand 0, single buffered']
    #allocation4 [shape = 's32[1]{0}', space=sflag, size = 0x4, scoped, tag = 'scoped memory for tpu_custom_call.1']
    %8 = vsyncpa [#allocation4], 0
    // Predicated region
    $region2: #{tpu_custom_call.1} parent=1 // pred_check
      _
    $region3: #{tpu_custom_call.1} parent=1 // pred_check_branch
      %10 = sbr.rel (0) target = $region5
    $region4: #{tpu_custom_call.1} parent=1 // pred_region
      _
    $region5: #{tpu_custom_call.1} parent=1 // pred_fallthru
      _
    // Predicated region
    $region6: #{tpu_custom_call.1} parent=1 // pred_check
      _
    $region7: #{tpu_custom_call.1} parent=1 // pred_check_branch
      %12 = sbr.rel (0) target = $region9
    $region8: #{tpu_custom_call.1} parent=1 // pred_region
      _
    $region9: #{tpu_custom_call.1} parent=1 // pred_fallthru
      _
    // Predicated region
    $region10: #{tpu_custom_call.1} parent=1 // pred_check
      _
    $region11: #{tpu_custom_call.1} parent=1 // pred_check_branch
      %14 = sbr.rel (0) target = $region13
    $region12: #{tpu_custom_call.1} parent=1 // pred_region
      _
    $region13: #{tpu_custom_call.1} parent=1 // pred_fallthru
      _
    %p15 = scmp.eq.s32.totalorder 0, 0
    // Predicated region
    $region14: #{tpu_custom_call.1} parent=1 // pred_check
      %p16 = pneg %p15
    $region15: #{tpu_custom_call.1} parent=1 // pred_check_branch
      %18 = sbr.rel (%p16) target = $region17
    $region16: #{tpu_custom_call.1} parent=1 // pred_region
      %vm19 = vcmask 785408
      %20 = vst.msk [vmem:[#allocation2] sm:$0xff] %vm19, 0.0
      %21 = vst.msk [vmem:[#allocation2 + $0x8] sm:$0xff] %vm19, 0.0
    $region17: #{tpu_custom_call.1} parent=1 // pred_fallthru
      _
    %v22 = vld [vmem:[#allocation2] sm:$0xff]
    %v23 = vld [vmem:[#allocation2 + $0x8] sm:$0xff]
    %v24 = vld [vmem:[%s0] sm:$0xff]
    %v25 = vld [vmem:[%s0 + $0x8] sm:$0xff]
    %v26 = vld [vmem:[%s1] sm:$0xff]
    %v27 = vld [vmem:[%s1 + $0x8] sm:$0xff]
    %v28 = vld [vmem:[%s1 + $0x10] sm:$0xff]
    %v29 = vld [vmem:[%s1 + $0x18] sm:$0xff]
    %v30 = vld [vmem:[%s1 + $0x20] sm:$0xff]
    %v31 = vld [vmem:[%s1 + $0x28] sm:$0xff]
    %v32 = vld [vmem:[%s1 + $0x30] sm:$0xff]
    %v33 = vld [vmem:[%s1 + $0x38] sm:$0xff]
    %v34 = vld [vmem:[%s1 + $0x40] sm:$0xff]
    %v35 = vld [vmem:[%s1 + $0x48] sm:$0xff]
    %v36 = vld [vmem:[%s1 + $0x50] sm:$0xff]
    %v37 = vld [vmem:[%s1 + $0x58] sm:$0xff]
    %vm38 = vcmask 261120
    %v40 = vsel %vm38, %v24, 0
    %v43 = vsel %vm38, %v25, 0
    %v46 = vsel %vm38, %v26, 0
    %v49 = vsel %vm38, %v27, 0
    %v52 = vsel %vm38, %v28, 0
    %v55 = vsel %vm38, %v29, 0
    %v58 = vsel %vm38, %v30, 0
    %v61 = vsel %vm38, %v31, 0
    %v64 = vsel %vm38, %v32, 0
    %v67 = vsel %vm38, %v33, 0
    %v70 = vsel %vm38, %v34, 0
    %v73 = vsel %vm38, %v35, 0
    %v76 = vsel %vm38, %v36, 0
    %v79 = vsel %vm38, %v37, 0
    %81 = vmatprep.subr.mxu0 0.0
    %82 = vmatpush1.xpose.msra.mxu0 0.0
    %83 = vmatprep.subr.mxu0 0.0
    %84 = vmatpush1.xpose.msra.mxu0 0.0
    %85 = vmatprep.subr.mxu0 0.0
    %86 = vmatpush1.xpose.msra.mxu0 0.0
    %87 = vmatprep.subr.mxu0 0.0
    %88 = vmatpush1.xpose.msra.mxu0 0.0
    %89 = vmatprep.subr.mxu0 0.0
    %90 = vmatpush1.xpose.msra.mxu0 %v79
    %91 = vmatprep.subr.mxu0 0.0
    %92 = vmatpush1.xpose.msra.mxu0 %v76
    %93 = vmatprep.subr.mxu0 0.0
    %94 = vmatpush1.xpose.msra.mxu0 %v73
    %95 = vmatprep.subr.mxu0 0.0
    %96 = vmatpush1.xpose.msra.mxu0 %v70
    %97 = vmatprep.subr.mxu0 0.0
    %98 = vmatpush1.xpose.msra.mxu0 %v67
    %99 = vmatprep.subr.mxu0 0.0
    %100 = vmatpush1.xpose.msra.mxu0 %v64
    %101 = vmatprep.subr.mxu0 0.0
    %102 = vmatpush1.xpose.msra.mxu0 %v61
    %103 = vmatprep.subr.mxu0 0.0
    %104 = vmatpush1.xpose.msra.mxu0 %v58
    %105 = vmatprep.subr.mxu0 0.0
    %106 = vmatpush1.xpose.msra.mxu0 %v55
    %107 = vmatprep.subr.mxu0 0.0
    %108 = vmatpush1.xpose.msra.mxu0 %v52
    %109 = vmatprep.subr.mxu0 0.0
    %110 = vmatpush1.xpose.msra.mxu0 %v49
    %111 = vmatprep.subr.mxu0 0.0
    %112 = vmatpush1.xpose.msra.mxu0 %v46
    %113 = vmatprep.subr.mxu0 0.0
    %114 = vmatpush2.xpose.msra.mxu0 0.0
    %115 = vmatprep.subr.mxu0 0.0
    %116 = vmatpush2.xpose.msra.mxu0 0.0
    %117 = vmatprep.subr.mxu0 0.0
    %118 = vmatpush2.xpose.msra.mxu0 0.0
    %119 = vmatprep.subr.mxu0 0.0
    %120 = vmatpush2.xpose.msra.mxu0 0.0
    %121 = vmatprep.subr.mxu0 0.0
    %122 = vmatpush2.xpose.msra.mxu0 0.0
    %123 = vmatprep.subr.mxu0 0.0
    %124 = vmatpush2.xpose.msra.mxu0 0.0
    %125 = vmatprep.subr.mxu0 0.0
    %126 = vmatpush2.xpose.msra.mxu0 0.0
    %127 = vmatprep.subr.mxu0 0.0
    %128 = vmatpush2.xpose.msra.mxu0 0.0
    %129 = vmatprep.subr.mxu0 0.0
    %130 = vmatpush2.xpose.msra.mxu0 0.0
    %131 = vmatprep.subr.mxu0 0.0
    %132 = vmatpush2.xpose.msra.mxu0 0.0
    %133 = vmatprep.subr.mxu0 0.0
    %134 = vmatpush2.xpose.msra.mxu0 0.0
    %135 = vmatprep.subr.mxu0 0.0
    %136 = vmatpush2.xpose.msra.mxu0 0.0
    %137 = vmatprep.subr.mxu0 0.0
    %138 = vmatpush2.xpose.msra.mxu0 0.0
    %139 = vmatprep.subr.mxu0 0.0
    %140 = vmatpush2.xpose.msra.mxu0 0.0
    %141 = vmatprep.subr.mxu0 0.0
    %142 = vmatpush2.xpose.msra.mxu0 0.0
    %143 = vmatprep.subr.mxu0 0.0
    %144 = vmatpush2.xpose.msra.mxu0 0.0
    %145 = vmatprep.mubr.f32.mxu0 0.0
    %146 = vmatmul.mubr.f32.gmra.mxu0 %v40
    %v147 = vpop.f32.mrf.mxu0
    %v148 = vadd.f32 0.0, %v147
    %v149 = vpop.f32.mrf.mxu0
    %150 = vmatprep.mubr.f32.mxu0 0.0
    %151 = vmatmul.mubr.f32.gmra.mxu0 %v43
    %v152 = vpop.f32.mrf.mxu0
    %v153 = vadd.f32 0.0, %v152
    %v154 = vpop.f32.mrf.mxu0
    %155 = vdwg.mxu0
    %v156 = vadd.f32 %v22, %v148
    %v157 = vadd.f32 %v23, %v153
    %vm158 = vcmask 785408
    %159 = vst.msk [vmem:[#allocation2] sm:$0xff] %vm158, %v156
    %160 = vst.msk [vmem:[#allocation2 + $0x8] sm:$0xff] %vm158, %v157
    // Predicated region
    $region18: #{tpu_custom_call.1} parent=1 // pred_check
      %p161 = pneg %p15
    $region19: #{tpu_custom_call.1} parent=1 // pred_check_branch
      %163 = sbr.rel (%p161) target = $region21
    $region20: #{tpu_custom_call.1} parent=1 // pred_region
      %v164 = vld [vmem:[#allocation2] sm:$0xff]
      %v165 = vld [vmem:[#allocation2 + $0x8] sm:$0xff]
      %v166 = vld [vmem:[%s2] sm:$0x1]
      %v168 = vlaneseq
      %v169 = vshrl.u32 %v168, 7
      %v170 = vsub.s32 0, %v169
      %v171 = vrot.slane %v166, %v170
      %v173 = vadd.f32 %v164, %v171
      %v174 = vadd.f32 %v165, %v171
      %175 = vst.msk [vmem:[#allocation3] sm:$0xff] %vm158, %v173
      %176 = vst.msk [vmem:[#allocation3 + $0x8] sm:$0xff] %vm158, %v174
    $region21: #{tpu_custom_call.1} parent=1 // pred_fallthru
      _
    // Predicated region
    $region22: #{tpu_custom_call.1} parent=1 // pred_check
      _
    $region23: #{tpu_custom_call.1} parent=1 // pred_check_branch
      %178 = sbr.rel (0) target = $region25
    $region24: #{tpu_custom_call.1} parent=1 // pred_region
      %s180 = ssub.s32 256, 256
      %181 = vsyncadd [#allocation4], %s180
      %s182 = sshll.u32 [#allocation3], 4
      %s183 = int_to_ptr.vmem [resolvable:$true] %s182
      %188 = dma.vmem_to_hbm [thread:$0]  %s183, 256, %s3, [#allocation4], 128, 128, 8
    $region25: #{tpu_custom_call.1} parent=1 // pred_fallthru
      _
    // Predicated region
    $region26: #{tpu_custom_call.1} parent=1 // pred_check
      _
    $region27: #{tpu_custom_call.1} parent=1 // pred_check_branch
      %190 = sbr.rel (0) target = $region29
    $region28: #{tpu_custom_call.1} parent=1 // pred_region
      %191 = dma.done [#allocation4], 256
    $region29: #{tpu_custom_call.1} parent=1 // pred_fallthru
      _
    %192 = vsyncpa [#allocation4], 1

</llo_original>
